<compile_context>
chip_gen: v5e
topology: v5e:2x2
jax: 0.10.0
libtpu: 0.0.40
codegen_flags: <defaults>
</compile_context>

<pallas_src>
import jax
import jax.numpy as jnp
from jax.experimental import pallas as pl
from jax.experimental.pallas import tpu as pltpu


# ---------------------------------------------------------------------------
# helpers
# ---------------------------------------------------------------------------
def _round_up(x, m):
    return ((x + m - 1) // m) * m


def _pad2d(a, rows, cols):
    r, c = a.shape
    if r == rows and c == cols:
        return a
    return jnp.zeros((rows, cols), a.dtype).at[:r, :c].set(a)


def prepare_lstm_params(w_ih, b_ih, w_hh, matmul_dtype=jnp.bfloat16):
    """One-time parameter prep (do NOT call per step / per scan iteration).

    w_ih: (4H, input_size)  PyTorch Linear layout, gate order [i, f, g, o]
    b_ih: (4H,)
    w_hh: (4H, hidden_size)
    Returns (w_ih_t, w_hh_t, b_2d, hidden_size, input_size) with
      w_ih_t: (Kp, 4*Hp)  matmul_dtype   (lane-aligned, pre-transposed)
      w_hh_t: (Hp, 4*Hp)  matmul_dtype
      b_2d:   (1, 4*Hp)   float32, forget-gate "+1" folded in.
    """
    four_h, input_size = w_ih.shape
    hidden_size = w_hh.shape[1]
    assert four_h == 4 * hidden_size

    Hp = _round_up(hidden_size, 128)
    Kp = _round_up(input_size, 128)

    w_ih_g = w_ih.astype(jnp.float32).reshape(4, hidden_size, input_size)
    w_hh_g = w_hh.astype(jnp.float32).reshape(4, hidden_size, hidden_size)
    b_g = b_ih.astype(jnp.float32).reshape(4, hidden_size)

    w_ih_p = jnp.zeros((4, Hp, Kp), jnp.float32).at[:, :hidden_size, :input_size].set(w_ih_g)
    w_hh_p = jnp.zeros((4, Hp, Hp), jnp.float32).at[:, :hidden_size, :hidden_size].set(w_hh_g)
    b_p = jnp.zeros((4, Hp), jnp.float32).at[:, :hidden_size].set(b_g)
    b_p = b_p.at[1, :hidden_size].add(1.0)  # fold forget-gate "+1" into the bias

    # (K, 4*Hp) so the kernel computes x @ W with no runtime transpose.
    w_ih_t = jnp.transpose(w_ih_p, (2, 0, 1)).reshape(Kp, 4 * Hp).astype(matmul_dtype)
    w_hh_t = jnp.transpose(w_hh_p, (2, 0, 1)).reshape(Hp, 4 * Hp).astype(matmul_dtype)
    b_2d = b_p.reshape(1, 4 * Hp)
    return (w_ih_t, w_hh_t, b_2d, hidden_size, input_size)


# ---------------------------------------------------------------------------
# single-step kernel  (grid over batch, "parallel")
# ---------------------------------------------------------------------------
def lstm_cell_kernel(x_ref, h_ref, c_ref, w_ih_t_ref, w_hh_t_ref, b_ref,
                     new_h_ref, new_c_ref):
    gates = (
        jnp.dot(x_ref[...], w_ih_t_ref[...], preferred_element_type=jnp.float32)
        + jnp.dot(h_ref[...], w_hh_t_ref[...], preferred_element_type=jnp.float32)
        + b_ref[...]
    )
    Hp = c_ref.shape[-1]
    i = gates[:, 0 * Hp:1 * Hp]      # 128-aligned lane slices
    f = gates[:, 1 * Hp:2 * Hp]      # "+1" already folded into bias
    g = gates[:, 2 * Hp:3 * Hp]
    o = gates[:, 3 * Hp:4 * Hp]

    c = c_ref[...].astype(jnp.float32)
    new_c = c * jax.nn.sigmoid(f) + jax.nn.sigmoid(i) * jnp.tanh(g)
    new_h = jnp.tanh(new_c) * jax.nn.sigmoid(o)

    new_c_ref[...] = new_c.astype(new_c_ref.dtype)
    new_h_ref[...] = new_h.astype(new_h_ref.dtype)


def lstm_cell(x, state, params, *, batch_tile=None):
    """Pallas LSTMCell single-step forward (matches module.forward).

    x:      (B, input_size)
    state:  (h, c) each (B, hidden_size), or None
    params: output of prepare_lstm_params
    returns (new_h, (new_h, new_c))
    """
    w_ih_t, w_hh_t, b_2d, hidden_size, input_size = params
    Kp, four_hp = w_ih_t.shape
    Hp = four_hp // 4
    matmul_dtype = w_ih_t.dtype

    B = x.shape[0]
    if state is None:
        zero = jnp.zeros((B, hidden_size), x.dtype)
        state = (zero, zero)
    h, c = state

    TB = batch_tile or min(256, _round_up(B, 8))
    Bp = _round_up(B, TB)

    x_p = _pad2d(x.astype(jnp.float32), Bp, Kp).astype(matmul_dtype)
    h_p = _pad2d(h.astype(jnp.float32), Bp, Hp).astype(matmul_dtype)
    c_p = _pad2d(c.astype(jnp.float32), Bp, Hp)

    itm = jnp.dtype(matmul_dtype).itemsize
    cost = pl.CostEstimate(
        flops=2 * Bp * (Kp + Hp) * four_hp,
        transcendentals=5 * Bp * Hp,
        bytes_accessed=(Bp * Kp * itm + Bp * Hp * itm + Bp * Hp * 4
                        + Kp * four_hp * itm + Hp * four_hp * itm + four_hp * 4
                        + 2 * Bp * Hp * 4),
    )

    new_h_p, new_c_p = pl.pallas_call(
        lstm_cell_kernel,
        out_shape=(
            jax.ShapeDtypeStruct((Bp, Hp), jnp.float32),
            jax.ShapeDtypeStruct((Bp, Hp), jnp.float32),
        ),
        grid_spec=pltpu.PrefetchScalarGridSpec(
            num_scalar_prefetch=0,
            grid=(Bp // TB,),
            in_specs=[
                pl.BlockSpec((TB, Kp), lambda b: (b, 0)),
                pl.BlockSpec((TB, Hp), lambda b: (b, 0)),
                pl.BlockSpec((TB, Hp), lambda b: (b, 0)),
                pl.BlockSpec((Kp, four_hp), lambda b: (0, 0)),   # weights resident
                pl.BlockSpec((Hp, four_hp), lambda b: (0, 0)),
                pl.BlockSpec((1, four_hp), lambda b: (0, 0)),
            ],
            out_specs=[
                pl.BlockSpec((TB, Hp), lambda b: (b, 0)),
                pl.BlockSpec((TB, Hp), lambda b: (b, 0)),
            ],
        ),
        compiler_params=pltpu.CompilerParams(dimension_semantics=("parallel",)),
        cost_estimate=cost,
    )(x_p, h_p, c_p, w_ih_t, w_hh_t, b_2d)

    new_h = new_h_p[:B, :hidden_size].astype(x.dtype)
    new_c = new_c_p[:B, :hidden_size].astype(x.dtype)
    return new_h, (new_h, new_c)


# ---------------------------------------------------------------------------
# fused-sequence kernel  (grid=(T,), weights resident, h/c in VMEM scratch)
# ---------------------------------------------------------------------------
def lstm_seq_kernel(x_ref, h0_ref, c0_ref, w_ih_t_ref, w_hh_t_ref, b_ref,
                    h_seq_ref, c_final_ref, h_sc, c_sc):
    t = pl.program_id(0)

    @pl.when(t == 0)
    def _():
        h_sc[...] = h0_ref[...]
        c_sc[...] = c0_ref[...]

    h = h_sc[...].astype(w_hh_t_ref.dtype)
    gates = (
        jnp.dot(x_ref[...], w_ih_t_ref[...], preferred_element_type=jnp.float32)
        + jnp.dot(h, w_hh_t_ref[...], preferred_element_type=jnp.float32)
        + b_ref[...]
    )
    Hp = c_sc.shape[-1]
    i = gates[:, 0 * Hp:1 * Hp]
    f = gates[:, 1 * Hp:2 * Hp]
    g = gates[:, 2 * Hp:3 * Hp]
    o = gates[:, 3 * Hp:4 * Hp]

    new_c = c_sc[...] * jax.nn.sigmoid(f) + jax.nn.sigmoid(i) * jnp.tanh(g)
    new_h = jnp.tanh(new_c) * jax.nn.sigmoid(o)

    c_sc[...] = new_c
    h_sc[...] = new_h
    h_seq_ref[...] = new_h

    @pl.when(t == pl.num_programs(0) - 1)
    def _():
        c_final_ref[...] = new_c


def lstm_sequence(x_seq, state, params):
    """Applies the cell over a sequence in ONE pallas_call (weights DMA'd once).

    x_seq: (T, B, input_size)
    state: (h0, c0) each (B, hidden_size), or None
    returns (h_seq (T, B, H), (h_T, c_T))
    """
    w_ih_t, w_hh_t, b_2d, hidden_size, input_size = params
    Kp, four_hp = w_ih_t.shape
    Hp = four_hp // 4
    matmul_dtype = w_ih_t.dtype

    T, B, _ = x_seq.shape
    if state is None:
        zero = jnp.zeros((B, hidden_size), x_seq.dtype)
        state = (zero, zero)
    h0, c0 = state

    Bp = _round_up(B, 8)
    x_p = (jnp.zeros((T, Bp, Kp), jnp.float32)
           .at[:, :B, :input_size].set(x_seq.astype(jnp.float32))
           .astype(matmul_dtype))
    h0_p = _pad2d(h0.astype(jnp.float32), Bp, Hp)
    c0_p = _pad2d(c0.astype(jnp.float32), Bp, Hp)

    h_seq_p, c_t_p = pl.pallas_call(
        lstm_seq_kernel,
        out_shape=(
            jax.ShapeDtypeStruct((T, Bp, Hp), jnp.float32),
            jax.ShapeDtypeStruct((Bp, Hp), jnp.float32),
        ),
        grid_spec=pltpu.PrefetchScalarGridSpec(
            num_scalar_prefetch=0,
            grid=(T,),
            in_specs=[
                pl.BlockSpec((None, Bp, Kp), lambda t: (t, 0, 0)),   # x streamed per step
                pl.BlockSpec((Bp, Hp), lambda t: (0, 0)),            # h0 (read at t==0)
                pl.BlockSpec((Bp, Hp), lambda t: (0, 0)),            # c0 (read at t==0)
                pl.BlockSpec((Kp, four_hp), lambda t: (0, 0)),       # weights resident
                pl.BlockSpec((Hp, four_hp), lambda t: (0, 0)),
                pl.BlockSpec((1, four_hp), lambda t: (0, 0)),
            ],
            out_specs=[
                pl.BlockSpec((None, Bp, Hp), lambda t: (t, 0, 0)),   # h per step
                pl.BlockSpec((Bp, Hp), lambda t: (0, 0)),            # final c
            ],
            scratch_shapes=[
                pltpu.VMEM((Bp, Hp), jnp.float32),                   # h carry
                pltpu.VMEM((Bp, Hp), jnp.float32),                   # c carry
            ],
        ),
        compiler_params=pltpu.CompilerParams(dimension_semantics=("arbitrary",)),
    )(x_p, h0_p, c0_p, w_ih_t, w_hh_t, b_2d)

    h_seq = h_seq_p[:, :B, :hidden_size].astype(x_seq.dtype)
    c_t = c_t_p[:B, :hidden_size].astype(x_seq.dtype)
    return h_seq, (h_seq[-1], c_t)


# ---------------------------------------------------------------------------
# pure-JAX references
# ---------------------------------------------------------------------------
def lstm_cell_ref(x, state, w_ih, b_ih, w_hh):
    B = x.shape[0]
    hidden_size = w_hh.shape[1]
    if state is None:
        zero = jnp.zeros((B, hidden_size), x.dtype)
        state = (zero, zero)
    h, c = state
    gates = x @ w_ih.T + b_ih + h @ w_hh.T
    i, f, g, o = jnp.split(gates, 4, axis=1)
    f = f + 1.0
    new_c = c * jax.nn.sigmoid(f) + jax.nn.sigmoid(i) * jnp.tanh(g)
    new_h = jnp.tanh(new_c) * jax.nn.sigmoid(o)
    return new_h, (new_h, new_c)


def lstm_sequence_ref(x_seq, state, w_ih, b_ih, w_hh):
    B = x_seq.shape[1]
    hidden_size = w_hh.shape[1]
    if state is None:
        zero = jnp.zeros((B, hidden_size), x_seq.dtype)
        state = (zero, zero)

    def step(carry, x_t):
        _, (nh, nc) = lstm_cell_ref(x_t, carry, w_ih, b_ih, w_hh)
        return (nh, nc), nh

    (h_t, c_t), h_seq = jax.lax.scan(step, state, x_seq)
    return h_seq, (h_t, c_t)


# ---------------------------------------------------------------------------
# main
# ---------------------------------------------------------------------------
if __name__ == "__main__":
    input_size = 16
    hidden_size = 32
    batch = 4
    seq_len = 8

    key = jax.random.PRNGKey(0)
    k_x, k_h, k_c, k_wih, k_whh, k_seq = jax.random.split(key, 6)

    limit = (6.0 / (input_size + 4 * hidden_size)) ** 0.5
    w_ih = jax.random.uniform(k_wih, (4 * hidden_size, input_size),
                              minval=-limit, maxval=limit, dtype=jnp.float32)
    b_ih = jnp.zeros((4 * hidden_size,), dtype=jnp.float32)
    w_hh = 0.1 * jax.random.normal(k_whh, (4 * hidden_size, hidden_size),
                                   dtype=jnp.float32)

    x = jax.random.normal(k_x, (batch, input_size), dtype=jnp.float32)
    h0 = jax.random.normal(k_h, (batch, hidden_size), dtype=jnp.float32)
    c0 = jax.random.normal(k_c, (batch, hidden_size), dtype=jnp.float32)
    x_seq = jax.random.normal(k_seq, (seq_len, batch, input_size), dtype=jnp.float32)

    # Parameter prep happens ONCE (transpose / pad / bias-fold hoisted out of the call path).
    params_f32 = prepare_lstm_params(w_ih, b_ih, w_hh, matmul_dtype=jnp.float32)
    params_bf16 = prepare_lstm_params(w_ih, b_ih, w_hh, matmul_dtype=jnp.bfloat16)

    # --- single step, explicit state ---
    ref_h, (_, ref_c) = lstm_cell_ref(x, (h0, c0), w_ih, b_ih, w_hh)

    nh_f32, (_, nc_f32) = lstm_cell(x, (h0, c0), params_f32)
    jax.block_until_ready((nh_f32, nc_f32))
    assert jnp.allclose(nh_f32, ref_h, atol=1e-4, rtol=1e-4)
    assert jnp.allclose(nc_f32, ref_c, atol=1e-4, rtol=1e-4)

    nh_bf16, (_, nc_bf16) = lstm_cell(x, (h0, c0), params_bf16)
    jax.block_until_ready((nh_bf16, nc_bf16))
    assert jnp.allclose(nh_bf16, ref_h, atol=2e-2, rtol=2e-2)
    assert jnp.allclose(nc_bf16, ref_c, atol=2e-2, rtol=2e-2)

    # --- single step, state=None (zero-init path of the module) ---
    ref_h0, (_, ref_c0) = lstm_cell_ref(x, None, w_ih, b_ih, w_hh)
    nh0, (_, nc0) = lstm_cell(x, None, params_f32)
    jax.block_until_ready((nh0, nc0))
    assert jnp.allclose(nh0, ref_h0, atol=1e-4, rtol=1e-4)
    assert jnp.allclose(nc0, ref_c0, atol=1e-4, rtol=1e-4)

    # --- fused sequence (one pallas_call over T steps) ---
    ref_hs, (ref_ht, ref_ct) = lstm_sequence_ref(x_seq, (h0, c0), w_ih, b_ih, w_hh)

    hs_f32, (ht_f32, ct_f32) = lstm_sequence(x_seq, (h0, c0), params_f32)
    jax.block_until_ready((hs_f32, ht_f32, ct_f32))
    assert jnp.allclose(hs_f32, ref_hs, atol=1e-4, rtol=1e-4)
    assert jnp.allclose(ct_f32, ref_ct, atol=1e-4, rtol=1e-4)

    hs_bf16, (ht_bf16, ct_bf16) = lstm_sequence(x_seq, (h0, c0), params_bf16)
    jax.block_until_ready((hs_bf16, ht_bf16, ct_bf16))
    assert jnp.allclose(hs_bf16, ref_hs, atol=5e-2, rtol=5e-2)
    assert jnp.allclose(ct_bf16, ref_ct, atol=5e-2, rtol=5e-2)

    print("KERNEL_OK")
</pallas_src>

<mosaic_0001>
module attributes {stable_mosaic.version = 11 : i64} {
  func.func @lstm_cell_kernel(%arg0: i32, %arg1: memref<8x128xf32, #tpu.memory_space<vmem>>, %arg2: memref<8x128xf32, #tpu.memory_space<vmem>>, %arg3: memref<8x128xf32, #tpu.memory_space<vmem>>, %arg4: memref<128x512xf32, #tpu.memory_space<vmem>>, %arg5: memref<128x512xf32, #tpu.memory_space<vmem>>, %arg6: memref<1x512xf32, #tpu.memory_space<vmem>>, %arg7: memref<8x128xf32, #tpu.memory_space<vmem>>, %arg8: memref<8x128xf32, #tpu.memory_space<vmem>>) attributes {dimension_semantics = [#tpu.dimension_semantics<parallel>], iteration_bounds = array<i64: 1>, scalar_prefetch = 0 : i64, scratch_operands = 0 : i64, tpu.core_type = #tpu.core_type<tc>, window_params = [{transform_indices = @transform_0, window_bounds = array<i64: 8, 128>}, {transform_indices = @transform_1, window_bounds = array<i64: 8, 128>}, {transform_indices = @transform_2, window_bounds = array<i64: 8, 128>}, {pipeline_mode = #tpu.pipeline_mode<synchronous>, transform_indices = @transform_3, window_bounds = array<i64: 128, 512>}, {pipeline_mode = #tpu.pipeline_mode<synchronous>, transform_indices = @transform_4, window_bounds = array<i64: 128, 512>}, {pipeline_mode = #tpu.pipeline_mode<synchronous>, transform_indices = @transform_5, window_bounds = array<i64: 1, 512>}, {transform_indices = @transform_6, window_bounds = array<i64: 8, 128>}, {transform_indices = @transform_7, window_bounds = array<i64: 8, 128>}]} {
    %c0 = arith.constant 0 : index
    %c0_0 = arith.constant 0 : index
    %0 = vector.load %arg1[%c0, %c0_0] : memref<8x128xf32, #tpu.memory_space<vmem>>, vector<8x128xf32>
    %c0_1 = arith.constant 0 : index
    %c0_2 = arith.constant 0 : index
    %1 = vector.load %arg4[%c0_1, %c0_2] : memref<128x512xf32, #tpu.memory_space<vmem>>, vector<128x512xf32>
    %cst = arith.constant dense<0.000000e+00> : vector<8x512xf32>
    %2 = tpu.matmul %0, %1, %cst {dimension_numbers = #tpu.dot_dimension_numbers<[1], [0], [0], [1], [0, 0, 1, 1], [], []>} : vector<8x128xf32>, vector<128x512xf32>, vector<8x512xf32> -> vector<8x512xf32>
    %c0_3 = arith.constant 0 : index
    %c0_4 = arith.constant 0 : index
    %3 = vector.load %arg2[%c0_3, %c0_4] : memref<8x128xf32, #tpu.memory_space<vmem>>, vector<8x128xf32>
    %c0_5 = arith.constant 0 : index
    %c0_6 = arith.constant 0 : index
    %4 = vector.load %arg5[%c0_5, %c0_6] : memref<128x512xf32, #tpu.memory_space<vmem>>, vector<128x512xf32>
    %cst_7 = arith.constant dense<0.000000e+00> : vector<8x512xf32>
    %5 = tpu.matmul %3, %4, %cst_7 {dimension_numbers = #tpu.dot_dimension_numbers<[1], [0], [0], [1], [0, 0, 1, 1], [], []>} : vector<8x128xf32>, vector<128x512xf32>, vector<8x512xf32> -> vector<8x512xf32>
    %6 = arith.addf %2, %5 : vector<8x512xf32>
    %c0_8 = arith.constant 0 : index
    %c0_9 = arith.constant 0 : index
    %7 = vector.load %arg6[%c0_8, %c0_9] : memref<1x512xf32, #tpu.memory_space<vmem>>, vector<1x512xf32>
    %8 = vector.broadcast %7 : vector<1x512xf32> to vector<8x512xf32>
    %9 = arith.addf %6, %8 : vector<8x512xf32>
    %10 = vector.extract_strided_slice %9 {offsets = [0, 0], sizes = [8, 128], strides = [1, 1]} : vector<8x512xf32> to vector<8x128xf32>
    %11 = vector.extract_strided_slice %9 {offsets = [0, 128], sizes = [8, 128], strides = [1, 1]} : vector<8x512xf32> to vector<8x128xf32>
    %12 = vector.extract_strided_slice %9 {offsets = [0, 256], sizes = [8, 128], strides = [1, 1]} : vector<8x512xf32> to vector<8x128xf32>
    %13 = vector.extract_strided_slice %9 {offsets = [0, 384], sizes = [8, 128], strides = [1, 1]} : vector<8x512xf32> to vector<8x128xf32>
    %c0_10 = arith.constant 0 : index
    %c0_11 = arith.constant 0 : index
    %14 = vector.load %arg3[%c0_10, %c0_11] : memref<8x128xf32, #tpu.memory_space<vmem>>, vector<8x128xf32>
    %15 = arith.negf %11 : vector<8x128xf32>
    %16 = math.exp %15 : vector<8x128xf32>
    %cst_12 = arith.constant 1.000000e+00 : f32
    %17 = vector.broadcast %cst_12 : f32 to vector<8x128xf32>
    %18 = arith.addf %17, %16 : vector<8x128xf32>
    %19 = arith.divf %17, %18 : vector<8x128xf32>
    %20 = arith.mulf %14, %19 : vector<8x128xf32>
    %21 = arith.negf %10 : vector<8x128xf32>
    %22 = math.exp %21 : vector<8x128xf32>
    %cst_13 = arith.constant 1.000000e+00 : f32
    %23 = vector.broadcast %cst_13 : f32 to vector<8x128xf32>
    %24 = arith.addf %23, %22 : vector<8x128xf32>
    %25 = arith.divf %23, %24 : vector<8x128xf32>
    %26 = math.tanh %12 : vector<8x128xf32>
    %27 = arith.mulf %25, %26 : vector<8x128xf32>
    %28 = arith.addf %20, %27 : vector<8x128xf32>
    %29 = math.tanh %28 : vector<8x128xf32>
    %30 = arith.negf %13 : vector<8x128xf32>
    %31 = math.exp %30 : vector<8x128xf32>
    %cst_14 = arith.constant 1.000000e+00 : f32
    %32 = vector.broadcast %cst_14 : f32 to vector<8x128xf32>
    %33 = arith.addf %32, %31 : vector<8x128xf32>
    %34 = arith.divf %32, %33 : vector<8x128xf32>
    %35 = arith.mulf %29, %34 : vector<8x128xf32>
    %c0_15 = arith.constant 0 : index
    %c0_16 = arith.constant 0 : index
    %36 = vector.load %arg8[%c0_15, %c0_16] : memref<8x128xf32, #tpu.memory_space<vmem>>, vector<8x128xf32>
    tpu.vector_store %arg8[%c0_15, %c0_16], %28 {strides = array<i32>} : memref<8x128xf32, #tpu.memory_space<vmem>>, vector<8x128xf32>,
    %c0_17 = arith.constant 0 : index
    %c0_18 = arith.constant 0 : index
    %37 = vector.load %arg7[%c0_17, %c0_18] : memref<8x128xf32, #tpu.memory_space<vmem>>, vector<8x128xf32>
    tpu.vector_store %arg7[%c0_17, %c0_18], %35 {strides = array<i32>} : memref<8x128xf32, #tpu.memory_space<vmem>>, vector<8x128xf32>,
    return
  }
  func.func @transform_0(%arg0: i32) -> (i32, i32) {
    %c0_i32 = arith.constant 0 : i32
    %c0_i32_0 = arith.constant 0 : i32
    return %arg0, %c0_i32 : i32, i32
  }
  func.func @transform_1(%arg0: i32) -> (i32, i32) {
    %c0_i32 = arith.constant 0 : i32
    %c0_i32_0 = arith.constant 0 : i32
    return %arg0, %c0_i32 : i32, i32
  }
  func.func @transform_2(%arg0: i32) -> (i32, i32) {
    %c0_i32 = arith.constant 0 : i32
    %c0_i32_0 = arith.constant 0 : i32
    return %arg0, %c0_i32 : i32, i32
  }
  func.func @transform_3(%arg0: i32) -> (i32, i32) {
    %c0_i32 = arith.constant 0 : i32
    %c0_i32_0 = arith.constant 0 : i32
    %c0_i32_1 = arith.constant 0 : i32
    return %c0_i32, %c0_i32_0 : i32, i32
  }
  func.func @transform_4(%arg0: i32) -> (i32, i32) {
    %c0_i32 = arith.constant 0 : i32
    %c0_i32_0 = arith.constant 0 : i32
    %c0_i32_1 = arith.constant 0 : i32
    return %c0_i32, %c0_i32_0 : i32, i32
  }
  func.func @transform_5(%arg0: i32) -> (i32, i32) {
    %c0_i32 = arith.constant 0 : i32
    %c0_i32_0 = arith.constant 0 : i32
    %c0_i32_1 = arith.constant 0 : i32
    return %c0_i32, %c0_i32_0 : i32, i32
  }
  func.func @transform_6(%arg0: i32) -> (i32, i32) {
    %c0_i32 = arith.constant 0 : i32
    %c0_i32_0 = arith.constant 0 : i32
    return %arg0, %c0_i32 : i32, i32
  }
  func.func @transform_7(%arg0: i32) -> (i32, i32) {
    %c0_i32 = arith.constant 0 : i32
    %c0_i32_0 = arith.constant 0 : i32
    return %arg0, %c0_i32 : i32, i32
  }
}

</mosaic_0001>

<llo_original>
// kernel: tpu_custom_call.1
$region0: #{tpu_custom_call.1}
  #allocation0 [shape = 'u32[]', space=smem, size = 0x4, offset = 0x4, fixed_abs, tag = 'smem constant byte address 0x4 - core index']
  #allocation1 [shape = 'u32[72,128]{1,0:T(1,128)}', space=vmem, size = 0x9000, scoped, tag = 'internal scratch']
  %s0 = inlined_call_operand.hbm [shape: f32[8,128], index: 0, kind: input, shape index: {}]
  %s1 = inlined_call_operand.hbm [shape: f32[8,128], index: 1, kind: input, shape index: {}]
  %s2 = inlined_call_operand.hbm [shape: f32[8,128], index: 2, kind: input, shape index: {}]
  %s3 = inlined_call_operand.hbm [shape: f32[128,512], index: 3, kind: input, shape index: {}]
  %s4 = inlined_call_operand.hbm [shape: f32[128,512], index: 4, kind: input, shape index: {}]
  %s5 = inlined_call_operand.vmem [shape: f32[1,512], index: 5, kind: input, shape index: {}]
  %s6 = inlined_call_operand.hbm [shape: f32[8,128], index: 6, kind: output, shape index: {0}]
  %s7 = inlined_call_operand.hbm [shape: f32[8,128], index: 7, kind: output, shape index: {1}]
  %8 = xla_tuple %s6, %s7
  %s9 = sld [smem:[#allocation0]]
  $region62: #{tpu_custom_call.1} parent=0
    _
  %s11 = ssub.s32 1, %s9
  %s12 = scalar_select 0, %s11, %s9
  $region1: #{tpu_custom_call.1} parent=0
    #allocation2 [shape = 'u8[4096]{0}', space=vmem, size = 0x1000, scoped, tag = 'input window, operand 0, single buffered']
    #allocation3 [shape = 's32[1]{0}', space=sflag, size = 0x4, scoped, tag = 'scoped memory for tpu_custom_call.1']
    #allocation4 [shape = 's32[1]{0}', space=sflag, size = 0x4, scoped, tag = 'scoped memory for tpu_custom_call.1']
    #allocation5 [shape = 'u8[4096]{0}', space=vmem, size = 0x1000, scoped, tag = 'input window, operand 1, single buffered']
    #allocation6 [shape = 's32[1]{0}', space=sflag, size = 0x4, scoped, tag = 'scoped memory for tpu_custom_call.1']
    #allocation7 [shape = 'u8[4096]{0}', space=vmem, size = 0x1000, scoped, tag = 'input window, operand 2, single buffered']
    #allocation8 [shape = 'u8[262144]{0}', space=vmem, size = 0x40000, scoped, tag = 'input window, operand 3, single buffered']
    #allocation9 [shape = 's32[1]{0}', space=sflag, size = 0x4, scoped, tag = 'scoped memory for tpu_custom_call.1']
    #allocation10 [shape = 'u8[262144]{0}', space=vmem, size = 0x40000, scoped, tag = 'input window, operand 4, single buffered']
    #allocation11 [shape = 'u8[4096]{0}', space=vmem, size = 0x1000, scoped, tag = 'output window, operand 0, single buffered']
    #allocation12 [shape = 'u8[4096]{0}', space=vmem, size = 0x1000, scoped, tag = 'output window, operand 1, single buffered']
    #allocation13 [shape = 's32[1]{0}', space=sflag, size = 0x4, scoped, tag = 'scoped memory for tpu_custom_call.1']
    %13 = vsyncpa [#allocation3], 0
    %14 = vsyncpa [#allocation6], 0
    %15 = vsyncpa [#allocation9], 0
    %16 = vsyncpa [#allocation4], 0
    %17 = vsyncpa [#allocation13], 0
    // Predicated region
    $region2: #{tpu_custom_call.1} parent=1 // pred_check
      _
    $region3: #{tpu_custom_call.1} parent=1 // pred_check_branch
      %19 = sbr.rel (0) target = $region5
    $region4: #{tpu_custom_call.1} parent=1 // pred_region
      %21 = vsyncadd [#allocation3], 0
      %s23 = sshll.u32 %s0, 4
      %s24 = int_to_ptr.hbm [resolvable:$true] %s23
      %s25 = sshll.u32 [#allocation2], 4
      %s26 = int_to_ptr.vmem [resolvable:$true] %s25
      %28 = dma.hbm_to_vmem [thread:$0]  %s24, 128, %s26, [#allocation3]
    $region5: #{tpu_custom_call.1} parent=1 // pred_fallthru
      _
    // Predicated region
    $region6: #{tpu_custom_call.1} parent=1 // pred_check
      _
    $region7: #{tpu_custom_call.1} parent=1 // pred_check_branch
      %30 = sbr.rel (0) target = $region9
    $region8: #{tpu_custom_call.1} parent=1 // pred_region
      %32 = vsyncadd [#allocation6], 0
      %s34 = sshll.u32 %s1, 4
      %s35 = int_to_ptr.hbm [resolvable:$true] %s34
      %s36 = sshll.u32 [#allocation5], 4
      %s37 = int_to_ptr.vmem [resolvable:$true] %s36
      %39 = dma.hbm_to_vmem [thread:$0]  %s35, 128, %s37, [#allocation6]
    $region9: #{tpu_custom_call.1} parent=1 // pred_fallthru
      _
    // Predicated region
    $region10: #{tpu_custom_call.1} parent=1 // pred_check
      _
    $region11: #{tpu_custom_call.1} parent=1 // pred_check_branch
      %41 = sbr.rel (0) target = $region13
    $region12: #{tpu_custom_call.1} parent=1 // pred_region
      %43 = vsyncadd [#allocation6], 0
      %s45 = sshll.u32 %s2, 4
      %s46 = int_to_ptr.hbm [resolvable:$true] %s45
      %s47 = sshll.u32 [#allocation7], 4
      %s48 = int_to_ptr.vmem [resolvable:$true] %s47
      %50 = dma.hbm_to_vmem [thread:$0]  %s46, 128, %s48, [#allocation6]
    $region13: #{tpu_custom_call.1} parent=1 // pred_fallthru
      _
    // Predicated region
    $region14: #{tpu_custom_call.1} parent=1 // pred_check
      _
    $region15: #{tpu_custom_call.1} parent=1 // pred_check_branch
      %52 = sbr.rel (0) target = $region17
    $region16: #{tpu_custom_call.1} parent=1 // pred_region
      %54 = vsyncadd [#allocation9], 0
      %s55 = sshll.u32 %s3, 4
      %s56 = int_to_ptr.hbm [resolvable:$true] %s55
      %s57 = sshll.u32 [#allocation8], 4
      %s58 = int_to_ptr.vmem [resolvable:$true] %s57
      %63 = dma.hbm_to_vmem [thread:$0]  %s56, 8192, %s58, [#allocation9], 512, 512, 32
    $region17: #{tpu_custom_call.1} parent=1 // pred_fallthru
      _
    // Predicated region
    $region18: #{tpu_custom_call.1} parent=1 // pred_check
      _
    $region19: #{tpu_custom_call.1} parent=1 // pred_check_branch
      %65 = sbr.rel (0) target = $region21
    $region20: #{tpu_custom_call.1} parent=1 // pred_region
      %67 = vsyncadd [#allocation9], 0
      %s68 = sshll.u32 %s4, 4
      %s69 = int_to_ptr.hbm [resolvable:$true] %s68
      %s70 = sshll.u32 [#allocation10], 4
      %s71 = int_to_ptr.vmem [resolvable:$true] %s70
      %76 = dma.hbm_to_vmem [thread:$0]  %s69, 8192, %s71, [#allocation9], 512, 512, 32
    $region21: #{tpu_custom_call.1} parent=1 // pred_fallthru
      _
    // Predicated region
    $region22: #{tpu_custom_call.1} parent=1 // pred_check
      _
    $region23: #{tpu_custom_call.1} parent=1 // pred_check_branch
      %78 = sbr.rel (0) target = $region25
    $region24: #{tpu_custom_call.1} parent=1 // pred_region
      _
    $region25: #{tpu_custom_call.1} parent=1 // pred_fallthru
      _
    // Predicated region
    $region26: #{tpu_custom_call.1} parent=1 // pred_check
      _
    $region27: #{tpu_custom_call.1} parent=1 // pred_check_branch
      %80 = sbr.rel (0) target = $region29
    $region28: #{tpu_custom_call.1} parent=1 // pred_region
      %82 = dma.done [#allocation3], 128
    $region29: #{tpu_custom_call.1} parent=1 // pred_fallthru
      _
    // Predicated region
    $region30: #{tpu_custom_call.1} parent=1 // pred_check
      _
    $region31: #{tpu_custom_call.1} parent=1 // pred_check_branch
      %84 = sbr.rel (0) target = $region33
    $region32: #{tpu_custom_call.1} parent=1 // pred_region
      %86 = dma.done [#allocation6], 128
    $region33: #{tpu_custom_call.1} parent=1 // pred_fallthru
      _
    // Predicated region
    $region34: #{tpu_custom_call.1} parent=1 // pred_check
      _
    $region35: #{tpu_custom_call.1} parent=1 // pred_check_branch
      %88 = sbr.rel (0) target = $region37
    $region36: #{tpu_custom_call.1} parent=1 // pred_region
      %90 = dma.done [#allocation6], 128
    $region37: #{tpu_custom_call.1} parent=1 // pred_fallthru
      _
    // Predicated region
    $region38: #{tpu_custom_call.1} parent=1 // pred_check
      _
    $region39: #{tpu_custom_call.1} parent=1 // pred_check_branch
      %92 = sbr.rel (0) target = $region41
    $region40: #{tpu_custom_call.1} parent=1 // pred_region
      %94 = dma.done [#allocation9], 8192
    $region41: #{tpu_custom_call.1} parent=1 // pred_fallthru
      _
    // Predicated region
    $region42: #{tpu_custom_call.1} parent=1 // pred_check
      _
    $region43: #{tpu_custom_call.1} parent=1 // pred_check_branch
      %96 = sbr.rel (0) target = $region45
    $region44: #{tpu_custom_call.1} parent=1 // pred_region
      %98 = dma.done [#allocation9], 8192
    $region45: #{tpu_custom_call.1} parent=1 // pred_fallthru
      _
    %v99 = vld [vmem:[#allocation2] sm:$0xff]
    %v100 = vld [vmem:[#allocation8] sm:$0xff]
    %v101 = vld [vmem:[#allocation8 + $0x8] sm:$0xff]
    %v102 = vld [vmem:[#allocation8 + $0x10] sm:$0xff]
    %v103 = vld [vmem:[#allocation8 + $0x18] sm:$0xff]
    %v104 = vld [vmem:[#allocation8 + $0x20] sm:$0xff]
    %v105 = vld [vmem:[#allocation8 + $0x28] sm:$0xff]
    %v106 = vld [vmem:[#allocation8 + $0x30] sm:$0xff]
    %v107 = vld [vmem:[#allocation8 + $0x38] sm:$0xff]
    %v108 = vld [vmem:[#allocation8 + $0x40] sm:$0xff]
    %v109 = vld [vmem:[#allocation8 + $0x48] sm:$0xff]
    %v110 = vld [vmem:[#allocation8 + $0x50] sm:$0xff]
    %v111 = vld [vmem:[#allocation8 + $0x58] sm:$0xff]
    %v112 = vld [vmem:[#allocation8 + $0x60] sm:$0xff]
    %v113 = vld [vmem:[#allocation8 + $0x68] sm:$0xff]
    %v114 = vld [vmem:[#allocation8 + $0x70] sm:$0xff]
    %v115 = vld [vmem:[#allocation8 + $0x78] sm:$0xff]
    %v116 = vld [vmem:[#allocation8 + $0x80] sm:$0xff]
    %v117 = vld [vmem:[#allocation8 + $0x88] sm:$0xff]
    %v118 = vld [vmem:[#allocation8 + $0x90] sm:$0xff]
    %v119 = vld [vmem:[#allocation8 + $0x98] sm:$0xff]
    %v120 = vld [vmem:[#allocation8 + $0xa0] sm:$0xff]
    %v121 = vld [vmem:[#allocation8 + $0xa8] sm:$0xff]
    %v122 = vld [vmem:[#allocation8 + $0xb0] sm:$0xff]
    %v123 = vld [vmem:[#allocation8 + $0xb8] sm:$0xff]
    %v124 = vld [vmem:[#allocation8 + $0xc0] sm:$0xff]
    %v125 = vld [vmem:[#allocation8 + $0xc8] sm:$0xff]
    %v126 = vld [vmem:[#allocation8 + $0xd0] sm:$0xff]
    %v127 = vld [vmem:[#allocation8 + $0xd8] sm:$0xff]
    %v128 = vld [vmem:[#allocation8 + $0xe0] sm:$0xff]
    %v129 = vld [vmem:[#allocation8 + $0xe8] sm:$0xff]
    %v130 = vld [vmem:[#allocation8 + $0xf0] sm:$0xff]
    %v131 = vld [vmem:[#allocation8 + $0xf8] sm:$0xff]
    %v132 = vld [vmem:[#allocation8 + $0x100] sm:$0xff]
    %v133 = vld [vmem:[#allocation8 + $0x108] sm:$0xff]
    %v134 = vld [vmem:[#allocation8 + $0x110] sm:$0xff]
    %v135 = vld [vmem:[#allocation8 + $0x118] sm:$0xff]
    %v136 = vld [vmem:[#allocation8 + $0x120] sm:$0xff]
    %v137 = vld [vmem:[#allocation8 + $0x128] sm:$0xff]
    %v138 = vld [vmem:[#allocation8 + $0x130] sm:$0xff]
    %v139 = vld [vmem:[#allocation8 + $0x138] sm:$0xff]
    %v140 = vld [vmem:[#allocation8 + $0x140] sm:$0xff]
    %v141 = vld [vmem:[#allocation8 + $0x148] sm:$0xff]
    %v142 = vld [vmem:[#allocation8 + $0x150] sm:$0xff]
    %v143 = vld [vmem:[#allocation8 + $0x158] sm:$0xff]
    %v144 = vld [vmem:[#allocation8 + $0x160] sm:$0xff]
    %v145 = vld [vmem:[#allocation8 + $0x168] sm:$0xff]
    %v146 = vld [vmem:[#allocation8 + $0x170] sm:$0xff]
    %v147 = vld [vmem:[#allocation8 + $0x178] sm:$0xff]
    %v148 = vld [vmem:[#allocation8 + $0x180] sm:$0xff]
    %v149 = vld [vmem:[#allocation8 + $0x188] sm:$0xff]
    %v150 = vld [vmem:[#allocation8 + $0x190] sm:$0xff]
    %v151 = vld [vmem:[#allocation8 + $0x198] sm:$0xff]
    %v152 = vld [vmem:[#allocation8 + $0x1a0] sm:$0xff]
    %v153 = vld [vmem:[#allocation8 + $0x1a8] sm:$0xff]
    %v154 = vld [vmem:[#allocation8 + $0x1b0] sm:$0xff]
    %v155 = vld [vmem:[#allocation8 + $0x1b8] sm:$0xff]
    %v156 = vld [vmem:[#allocation8 + $0x1c0] sm:$0xff]
    %v157 = vld [vmem:[#allocation8 + $0x1c8] sm:$0xff]
    %v158 = vld [vmem:[#allocation8 + $0x1d0] sm:$0xff]
    %v159 = vld [vmem:[#allocation8 + $0x1d8] sm:$0xff]
    %v160 = vld [vmem:[#allocation8 + $0x1e0] sm:$0xff]
    %v161 = vld [vmem:[#allocation8 + $0x1e8] sm:$0xff]
    %v162 = vld [vmem:[#allocation8 + $0x1f0] sm:$0xff]
    %v163 = vld [vmem:[#allocation8 + $0x1f8] sm:$0xff]
    %v164 = vld [vmem:[#allocation5] sm:$0xff]
    %v165 = vld [vmem:[#allocation10] sm:$0xff]
    %v166 = vld [vmem:[#allocation10 + $0x8] sm:$0xff]
    %v167 = vld [vmem:[#allocation10 + $0x10] sm:$0xff]
    %v168 = vld [vmem:[#allocation10 + $0x18] sm:$0xff]
    %v169 = vld [vmem:[#allocation10 + $0x20] sm:$0xff]
    %v170 = vld [vmem:[#allocation10 + $0x28] sm:$0xff]
    %v171 = vld [vmem:[#allocation10 + $0x30] sm:$0xff]
    %v172 = vld [vmem:[#allocation10 + $0x38] sm:$0xff]
    %v173 = vld [vmem:[#allocation10 + $0x40] sm:$0xff]
    %v174 = vld [vmem:[#allocation10 + $0x48] sm:$0xff]
    %v175 = vld [vmem:[#allocation10 + $0x50] sm:$0xff]
    %v176 = vld [vmem:[#allocation10 + $0x58] sm:$0xff]
    %v177 = vld [vmem:[#allocation10 + $0x60] sm:$0xff]
    %v178 = vld [vmem:[#allocation10 + $0x68] sm:$0xff]
    %v179 = vld [vmem:[#allocation10 + $0x70] sm:$0xff]
    %v180 = vld [vmem:[#allocation10 + $0x78] sm:$0xff]
    %v181 = vld [vmem:[#allocation10 + $0x80] sm:$0xff]
    %v182 = vld [vmem:[#allocation10 + $0x88] sm:$0xff]
    %v183 = vld [vmem:[#allocation10 + $0x90] sm:$0xff]
    %v184 = vld [vmem:[#allocation10 + $0x98] sm:$0xff]
    %v185 = vld [vmem:[#allocation10 + $0xa0] sm:$0xff]
    %v186 = vld [vmem:[#allocation10 + $0xa8] sm:$0xff]
    %v187 = vld [vmem:[#allocation10 + $0xb0] sm:$0xff]
    %v188 = vld [vmem:[#allocation10 + $0xb8] sm:$0xff]
    %v189 = vld [vmem:[#allocation10 + $0xc0] sm:$0xff]
    %v190 = vld [vmem:[#allocation10 + $0xc8] sm:$0xff]
    %v191 = vld [vmem:[#allocation10 + $0xd0] sm:$0xff]
    %v192 = vld [vmem:[#allocation10 + $0xd8] sm:$0xff]
    %v193 = vld [vmem:[#allocation10 + $0xe0] sm:$0xff]
    %v194 = vld [vmem:[#allocation10 + $0xe8] sm:$0xff]
    %v195 = vld [vmem:[#allocation10 + $0xf0] sm:$0xff]
    %v196 = vld [vmem:[#allocation10 + $0xf8] sm:$0xff]
    %v197 = vld [vmem:[#allocation10 + $0x100] sm:$0xff]
    %v198 = vld [vmem:[#allocation10 + $0x108] sm:$0xff]
    %v199 = vld [vmem:[#allocation10 + $0x110] sm:$0xff]
    %v200 = vld [vmem:[#allocation10 + $0x118] sm:$0xff]
    %v201 = vld [vmem:[#allocation10 + $0x120] sm:$0xff]
    %v202 = vld [vmem:[#allocation10 + $0x128] sm:$0xff]
    %v203 = vld [vmem:[#allocation10 + $0x130] sm:$0xff]
    %v204 = vld [vmem:[#allocation10 + $0x138] sm:$0xff]
    %v205 = vld [vmem:[#allocation10 + $0x140] sm:$0xff]
    %v206 = vld [vmem:[#allocation10 + $0x148] sm:$0xff]
    %v207 = vld [vmem:[#allocation10 + $0x150] sm:$0xff]
    %v208 = vld [vmem:[#allocation10 + $0x158] sm:$0xff]
    %v209 = vld [vmem:[#allocation10 + $0x160] sm:$0xff]
    %v210 = vld [vmem:[#allocation10 + $0x168] sm:$0xff]
    %v211 = vld [vmem:[#allocation10 + $0x170] sm:$0xff]
    %v212 = vld [vmem:[#allocation10 + $0x178] sm:$0xff]
    %v213 = vld [vmem:[#allocation10 + $0x180] sm:$0xff]
    %v214 = vld [vmem:[#allocation10 + $0x188] sm:$0xff]
    %v215 = vld [vmem:[#allocation10 + $0x190] sm:$0xff]
    %v216 = vld [vmem:[#allocation10 + $0x198] sm:$0xff]
    %v217 = vld [vmem:[#allocation10 + $0x1a0] sm:$0xff]
    %v218 = vld [vmem:[#allocation10 + $0x1a8] sm:$0xff]
    %v219 = vld [vmem:[#allocation10 + $0x1b0] sm:$0xff]
    %v220 = vld [vmem:[#allocation10 + $0x1b8] sm:$0xff]
    %v221 = vld [vmem:[#allocation10 + $0x1c0] sm:$0xff]
    %v222 = vld [vmem:[#allocation10 + $0x1c8] sm:$0xff]
    %v223 = vld [vmem:[#allocation10 + $0x1d0] sm:$0xff]
    %v224 = vld [vmem:[#allocation10 + $0x1d8] sm:$0xff]
    %v225 = vld [vmem:[#allocation10 + $0x1e0] sm:$0xff]
    %v226 = vld [vmem:[#allocation10 + $0x1e8] sm:$0xff]
    %v227 = vld [vmem:[#allocation10 + $0x1f0] sm:$0xff]
    %v228 = vld [vmem:[#allocation10 + $0x1f8] sm:$0xff]
    %229 = vmatpush.msra.mxu0 %v225
    %230 = vmatpush.msra.mxu0 %v221
    %231 = vmatpush.msra.mxu0 %v217
    %232 = vmatpush.msra.mxu0 %v213
    %233 = vmatpush.msra.mxu0 %v209
    %234 = vmatpush.msra.mxu0 %v205
    %235 = vmatpush.msra.mxu0 %v201
    %236 = vmatpush.msra.mxu0 %v197
    %237 = vmatpush.msra.mxu0 %v193
    %238 = vmatpush.msra.mxu0 %v189
    %239 = vmatpush.msra.mxu0 %v185
    %240 = vmatpush.msra.mxu0 %v181
    %241 = vmatpush.msra.mxu0 %v177
    %242 = vmatpush.msra.mxu0 %v173
    %243 = vmatpush.msra.mxu0 %v169
    %244 = vmatpush.msra.mxu0 %v165
    %245 = vmatmul.f32.gmra.mxu0 %v164
    %v246 = vpop.f32.mrf.mxu0
    %v247 = vadd.f32 0.0, %v246
    %248 = vdwg.mxu0
    %249 = vmatpush.msra.mxu0 %v226
    %250 = vmatpush.msra.mxu0 %v222
    %251 = vmatpush.msra.mxu0 %v218
    %252 = vmatpush.msra.mxu0 %v214
    %253 = vmatpush.msra.mxu0 %v210
    %254 = vmatpush.msra.mxu0 %v206
    %255 = vmatpush.msra.mxu0 %v202
    %256 = vmatpush.msra.mxu0 %v198
    %257 = vmatpush.msra.mxu0 %v194
    %258 = vmatpush.msra.mxu0 %v190
    %259 = vmatpush.msra.mxu0 %v186
    %260 = vmatpush.msra.mxu0 %v182
    %261 = vmatpush.msra.mxu0 %v178
    %262 = vmatpush.msra.mxu0 %v174
    %263 = vmatpush.msra.mxu0 %v170
    %264 = vmatpush.msra.mxu0 %v166
    %265 = vmatmul.f32.gmra.mxu0 %v164
    %v266 = vpop.f32.mrf.mxu0
    %v267 = vadd.f32 0.0, %v266
    %268 = vdwg.mxu0
    %269 = vmatpush.msra.mxu0 %v227
    %270 = vmatpush.msra.mxu0 %v223
    %271 = vmatpush.msra.mxu0 %v219
    %272 = vmatpush.msra.mxu0 %v215
    %273 = vmatpush.msra.mxu0 %v211
    %274 = vmatpush.msra.mxu0 %v207
    %275 = vmatpush.msra.mxu0 %v203
    %276 = vmatpush.msra.mxu0 %v199
    %277 = vmatpush.msra.mxu0 %v195
    %278 = vmatpush.msra.mxu0 %v191
    %279 = vmatpush.msra.mxu0 %v187
    %280 = vmatpush.msra.mxu0 %v183
    %281 = vmatpush.msra.mxu0 %v179
    %282 = vmatpush.msra.mxu0 %v175
    %283 = vmatpush.msra.mxu0 %v171
    %284 = vmatpush.msra.mxu0 %v167
    %285 = vmatmul.f32.gmra.mxu0 %v164
    %v286 = vpop.f32.mrf.mxu0
    %v287 = vadd.f32 0.0, %v286
    %288 = vdwg.mxu0
    %289 = vmatpush.msra.mxu0 %v228
    %290 = vmatpush.msra.mxu0 %v224
    %291 = vmatpush.msra.mxu0 %v220
    %292 = vmatpush.msra.mxu0 %v216
    %293 = vmatpush.msra.mxu0 %v212
    %294 = vmatpush.msra.mxu0 %v208
    %295 = vmatpush.msra.mxu0 %v204
    %296 = vmatpush.msra.mxu0 %v200
    %297 = vmatpush.msra.mxu0 %v196
    %298 = vmatpush.msra.mxu0 %v192
    %299 = vmatpush.msra.mxu0 %v188
    %300 = vmatpush.msra.mxu0 %v184
    %301 = vmatpush.msra.mxu0 %v180
    %302 = vmatpush.msra.mxu0 %v176
    %303 = vmatpush.msra.mxu0 %v172
    %304 = vmatpush.msra.mxu0 %v168
    %305 = vmatmul.f32.gmra.mxu0 %v164
    %v306 = vpop.f32.mrf.mxu0
    %v307 = vadd.f32 0.0, %v306
    %308 = vdwg.mxu0
    %309 = vmatpush.msra.mxu0 %v160
    %310 = vmatpush.msra.mxu0 %v156
    %311 = vmatpush.msra.mxu0 %v152
    %312 = vmatpush.msra.mxu0 %v148
    %313 = vmatpush.msra.mxu0 %v144
    %314 = vmatpush.msra.mxu0 %v140
    %315 = vmatpush.msra.mxu0 %v136
    %316 = vmatpush.msra.mxu0 %v132
    %317 = vmatpush.msra.mxu0 %v128
    %318 = vmatpush.msra.mxu0 %v124
    %319 = vmatpush.msra.mxu0 %v120
    %320 = vmatpush.msra.mxu0 %v116
    %321 = vmatpush.msra.mxu0 %v112
    %322 = vmatpush.msra.mxu0 %v108
    %323 = vmatpush.msra.mxu0 %v104
    %324 = vmatpush.msra.mxu0 %v100
    %325 = vmatmul.f32.gmra.mxu0 %v99
    %v326 = vpop.f32.mrf.mxu0
    %v327 = vadd.f32 %v247, %v326
    %328 = vdwg.mxu0
    %329 = vmatpush.msra.mxu0 %v161
    %330 = vmatpush.msra.mxu0 %v157
    %331 = vmatpush.msra.mxu0 %v153
    %332 = vmatpush.msra.mxu0 %v149
    %333 = vmatpush.msra.mxu0 %v145
    %334 = vmatpush.msra.mxu0 %v141
    %335 = vmatpush.msra.mxu0 %v137
    %336 = vmatpush.msra.mxu0 %v133
    %337 = vmatpush.msra.mxu0 %v129
    %338 = vmatpush.msra.mxu0 %v125
    %339 = vmatpush.msra.mxu0 %v121
    %340 = vmatpush.msra.mxu0 %v117
    %341 = vmatpush.msra.mxu0 %v113
    %342 = vmatpush.msra.mxu0 %v109
    %343 = vmatpush.msra.mxu0 %v105
    %344 = vmatpush.msra.mxu0 %v101
    %345 = vmatmul.f32.gmra.mxu0 %v99
    %v346 = vpop.f32.mrf.mxu0
    %v347 = vadd.f32 %v267, %v346
    %348 = vdwg.mxu0
    %349 = vmatpush.msra.mxu0 %v162
    %350 = vmatpush.msra.mxu0 %v158
    %351 = vmatpush.msra.mxu0 %v154
    %352 = vmatpush.msra.mxu0 %v150
    %353 = vmatpush.msra.mxu0 %v146
    %354 = vmatpush.msra.mxu0 %v142
    %355 = vmatpush.msra.mxu0 %v138
    %356 = vmatpush.msra.mxu0 %v134
    %357 = vmatpush.msra.mxu0 %v130
    %358 = vmatpush.msra.mxu0 %v126
    %359 = vmatpush.msra.mxu0 %v122
    %360 = vmatpush.msra.mxu0 %v118
    %361 = vmatpush.msra.mxu0 %v114
    %362 = vmatpush.msra.mxu0 %v110
    %363 = vmatpush.msra.mxu0 %v106
    %364 = vmatpush.msra.mxu0 %v102
    %365 = vmatmul.f32.gmra.mxu0 %v99
    %v366 = vpop.f32.mrf.mxu0
    %v367 = vadd.f32 %v287, %v366
    %368 = vdwg.mxu0
    %369 = vmatpush.msra.mxu0 %v163
    %370 = vmatpush.msra.mxu0 %v159
    %371 = vmatpush.msra.mxu0 %v155
    %372 = vmatpush.msra.mxu0 %v151
    %373 = vmatpush.msra.mxu0 %v147
    %374 = vmatpush.msra.mxu0 %v143
    %375 = vmatpush.msra.mxu0 %v139
    %376 = vmatpush.msra.mxu0 %v135
    %377 = vmatpush.msra.mxu0 %v131
    %378 = vmatpush.msra.mxu0 %v127
    %379 = vmatpush.msra.mxu0 %v123
    %380 = vmatpush.msra.mxu0 %v119
    %381 = vmatpush.msra.mxu0 %v115
    %382 = vmatpush.msra.mxu0 %v111
    %383 = vmatpush.msra.mxu0 %v107
    %384 = vmatpush.msra.mxu0 %v103
    %385 = vmatmul.f32.gmra.mxu0 %v99
    %v386 = vpop.f32.mrf.mxu0
    %v387 = vadd.f32 %v307, %v386
    %388 = vdwg.mxu0
    %v389 = vld [vmem:[%s5] sm:$0xf]
    %v391 = vperm.slane %v389, 0
    %v392 = vperm.slane %v389, 1
    %v393 = vperm.slane %v389, 2
    %v394 = vperm.slane %v389, 3
    %v399 = vadd.f32 %v327, %v391
    %v400 = vadd.f32 %v347, %v392
    %v401 = vadd.f32 %v367, %v393
    %v402 = vadd.f32 %v387, %v394
    %v403 = vld [vmem:[#allocation7] sm:$0xff]
    %v404 = vxor.u32 %v400, 2147483648
    %v405 = vmul.f32 %v404, 1.442695
    %v406 = vpow.pop %v405
    %v407 = vadd.f32 %v406, 1.0
    %v408 = vrcp.pop %v407
    %v409 = vmul.f32 %v407, %v408
    %v410 = vsub.f32 1.0, %v409
    %v411 = vmul.f32 %v408, %v410
    %v412 = vadd.f32 %v408, %v411
    %vm413 = vweird.f32 %v407
    %vm414 = vweird.f32 %v408
    %vm415 = vmor %vm413, %vm414
    %v416 = vsel %vm415, %v408, %v412
    %v417 = vand.u32 2147483647, %v407
    %vm418 = vcmp.eq.f32.partialorder %v417, 8.507059e+37
    %v419 = vand.u32 %v407, 2147483648
    %v420 = vor.u32 1.1754944e-38, %v419
    %v421 = vsel %vm418, %v420, %v416
    %v422 = vmul.f32 1.0, %v421
    %v423 = vmul.f32 %v403, %v422
    %v424 = vxor.u32 %v399, 2147483648
    %v425 = vmul.f32 %v424, 1.442695
    %v426 = vpow.pop %v425
    %v427 = vadd.f32 %v426, 1.0
    %v428 = vrcp.pop %v427
    %v429 = vmul.f32 %v427, %v428
    %v430 = vsub.f32 1.0, %v429
    %v431 = vmul.f32 %v428, %v430
    %v432 = vadd.f32 %v428, %v431
    %vm433 = vweird.f32 %v427
    %vm434 = vweird.f32 %v428
    %vm435 = vmor %vm433, %vm434
    %v436 = vsel %vm435, %v428, %v432
    %v437 = vand.u32 2147483647, %v427
    %vm438 = vcmp.eq.f32.partialorder %v437, 8.507059e+37
    %v439 = vand.u32 %v427, 2147483648
    %v440 = vor.u32 1.1754944e-38, %v439
    %v441 = vsel %vm438, %v440, %v436
    %v442 = vmul.f32 1.0, %v441
    %v443 = vtanh.pop %v401
    %v444 = vmul.f32 %v442, %v443
    %v445 = vadd.f32 %v423, %v444
    %v446 = vtanh.pop %v445
    %v447 = vxor.u32 %v402, 2147483648
    %v448 = vmul.f32 %v447, 1.442695
    %v449 = vpow.pop %v448
    %v450 = vadd.f32 %v449, 1.0
    %v451 = vrcp.pop %v450
    %v452 = vmul.f32 %v450, %v451
    %v453 = vsub.f32 1.0, %v452
    %v454 = vmul.f32 %v451, %v453
    %v455 = vadd.f32 %v451, %v454
    %vm456 = vweird.f32 %v450
    %vm457 = vweird.f32 %v451
    %vm458 = vmor %vm456, %vm457
    %v459 = vsel %vm458, %v451, %v455
    %v460 = vand.u32 2147483647, %v450
    %vm461 = vcmp.eq.f32.partialorder %v460, 8.507059e+37
    %v462 = vand.u32 %v450, 2147483648
    %v463 = vor.u32 1.1754944e-38, %v462
    %v464 = vsel %vm461, %v463, %v459
    %v465 = vmul.f32 1.0, %v464
    %v466 = vmul.f32 %v446, %v465
    %467 = vst [vmem:[#allocation12] sm:$0xff] %v445
    %468 = vst [vmem:[#allocation11] sm:$0xff] %v466
    // Predicated region
    $region46: #{tpu_custom_call.1} parent=1 // pred_check
      _
    $region47: #{tpu_custom_call.1} parent=1 // pred_check_branch
      %470 = sbr.rel (0) target = $region49
    $region48: #{tpu_custom_call.1} parent=1 // pred_region
      %472 = vsyncadd [#allocation4], 0
      %s474 = sshll.u32 [#allocation11], 4
      %s475 = int_to_ptr.vmem [resolvable:$true] %s474
      %s476 = sshll.u32 %s6, 4
      %s477 = int_to_ptr.hbm [resolvable:$true] %s476
      %479 = dma.vmem_to_hbm [thread:$0]  %s475, 128, %s477, [#allocation4]
    $region49: #{tpu_custom_call.1} parent=1 // pred_fallthru
      _
    // Predicated region
    $region50: #{tpu_custom_call.1} parent=1 // pred_check
      _
    $region51: #{tpu_custom_call.1} parent=1 // pred_check_branch
      %481 = sbr.rel (0) target = $region53
    $region52: #{tpu_custom_call.1} parent=1 // pred_region
      %483 = vsyncadd [#allocation13], 0
      %s485 = sshll.u32 [#allocation12], 4
      %s486 = int_to_ptr.vmem [resolvable:$true] %s485
      %s487 = sshll.u32 %s7, 4
      %s488 = int_to_ptr.hbm [resolvable:$true] %s487
      %490 = dma.vmem_to_hbm [thread:$0]  %s486, 128, %s488, [#allocation13]
    $region53: #{tpu_custom_call.1} parent=1 // pred_fallthru
      _
    // Predicated region
    $region54: #{tpu_custom_call.1} parent=1 // pred_check
      _
    $region55: #{tpu_custom_call.1} parent=1 // pred_check_branch
      %492 = sbr.rel (0) target = $region57
    $region56: #{tpu_custom_call.1} parent=1 // pred_region
      %494 = dma.done [#allocation4], 128
    $region57: #{tpu_custom_call.1} parent=1 // pred_fallthru
      _
    // Predicated region
    $region58: #{tpu_custom_call.1} parent=1 // pred_check
      _
    $region59: #{tpu_custom_call.1} parent=1 // pred_check_branch
      %496 = sbr.rel (0) target = $region61
    $region60: #{tpu_custom_call.1} parent=1 // pred_region
      %498 = dma.done [#allocation13], 128
    $region61: #{tpu_custom_call.1} parent=1 // pred_fallthru
      _
    %499 = vsyncpa [#allocation3], 1
    %500 = vsyncpa [#allocation6], 1
    %501 = vsyncpa [#allocation9], 1
    %502 = vsyncpa [#allocation4], 1
    %503 = vsyncpa [#allocation13], 1

</llo_original>
